<compile_context>
chip_gen: v7x
topology: tpu7x:2x2x1
jax: 0.10.0
libtpu: 0.0.40
codegen_flags: <defaults>
</compile_context>

<pallas_src>
import functools

import jax
import jax.numpy as jnp
from jax.experimental import pallas as pl
from jax.experimental.pallas import tpu as pltpu

INPUT_SIZE = 9
HIDDEN_SIZE = 16
OUTPUT_SIZE = 9


def _mlp_kernel(xt_ref, w1_ref, b1_ref, w2_ref, b2_ref, ot_ref):
    # xt: (9, TB) bf16 | w1: (16, 9) f32 | b1: (16, 1) f32
    # w2: (9, 16) f32  | b2: (9, 1) f32  | ot: (9, TB) f32
    x = xt_ref[...].astype(jnp.float32)                                  # (9, TB)
    h = jnp.dot(w1_ref[...], x, preferred_element_type=jnp.float32)      # (16, TB)
    h = jnp.maximum(h + b1_ref[...], 0.0)                                # bias + ReLU (f32)
    out = jnp.dot(w2_ref[...], h, preferred_element_type=jnp.float32)    # (9, TB)
    ot_ref[...] = out + b2_ref[...]


def _round_up(n, m):
    return (n + m - 1) // m * m


@functools.partial(jax.jit, static_argnames=("tile_b",))
def tictactoe_forward(x, w1, b1, w2, b2, *, tile_b=1024):
    """x: (B, 9) f32 | w1: (16, 9) | b1: (16, 1) | w2: (9, 16) | b2: (9, 1) -> (B, 9) f32."""
    B = x.shape[0]
    # Batch tile: multiple of 128 lanes, capped at tile_b.  Even at 1024 lanes
    # the double-buffered x (bf16) + out (f32) tiles are well under the default
    # scoped-VMEM budget on every generation (including v7x's 64 MiB part).
    TB = min(tile_b, _round_up(max(B, 1), 128))
    B_pad = _round_up(B, TB)

    # Lane-dense layout: batch on the last (lane) axis; stream x as bf16.
    xt = jnp.zeros((INPUT_SIZE, B_pad), jnp.bfloat16)
    xt = xt.at[:, :B].set(x.T.astype(jnp.bfloat16))

    grid = (B_pad // TB,)
    resident = lambda shape: pl.BlockSpec(shape, lambda i: (0, 0))

    out_t = pl.pallas_call(
        _mlp_kernel,
        out_shape=jax.ShapeDtypeStruct((OUTPUT_SIZE, B_pad), jnp.float32),
        grid_spec=pltpu.PrefetchScalarGridSpec(
            num_scalar_prefetch=0,
            grid=grid,
            in_specs=[
                pl.BlockSpec((INPUT_SIZE, TB), lambda i: (0, i)),  # streamed activations
                resident(w1.shape),
                resident(b1.shape),
                resident(w2.shape),
                resident(b2.shape),
            ],
            out_specs=pl.BlockSpec((OUTPUT_SIZE, TB), lambda i: (0, i)),
        ),
        compiler_params=pltpu.CompilerParams(
            dimension_semantics=("parallel",),  # shard batch tiles across v7x's 2 TCs
        ),
    )(xt, w1, b1, w2, b2)

    return out_t[:, :B].T


def init_params(key):
    """Deterministic init matching nn.Linear (PyTorch (out, in) weight layout)."""
    k1, k2, k3, k4 = jax.random.split(key, 4)
    bound1 = 1.0 / jnp.sqrt(jnp.float32(INPUT_SIZE))
    bound2 = 1.0 / jnp.sqrt(jnp.float32(HIDDEN_SIZE))
    w1 = jax.random.uniform(k1, (HIDDEN_SIZE, INPUT_SIZE), jnp.float32, -bound1, bound1)
    b1 = jax.random.uniform(k2, (HIDDEN_SIZE, 1), jnp.float32, -bound1, bound1)
    w2 = jax.random.uniform(k3, (OUTPUT_SIZE, HIDDEN_SIZE), jnp.float32, -bound2, bound2)
    b2 = jax.random.uniform(k4, (OUTPUT_SIZE, 1), jnp.float32, -bound2, bound2)
    return w1, b1, w2, b2


def reference_forward(x, w1, b1, w2, b2):
    h = jnp.maximum(x @ w1.T + b1.T, 0.0)
    return h @ w2.T + b2.T


if __name__ == "__main__":
    key = jax.random.PRNGKey(0)
    kx, kp = jax.random.split(key)
    w1, b1, w2, b2 = init_params(kp)

    # Small batch (board encodings in {-1, 0, 1}).
    batch = 2
    x = jax.random.randint(kx, (batch, INPUT_SIZE), -1, 2).astype(jnp.float32)
    out = jax.block_until_ready(tictactoe_forward(x, w1, b1, w2, b2))
    ref = reference_forward(x, w1, b1, w2, b2)
    assert out.shape == (batch, OUTPUT_SIZE)
    assert jnp.allclose(out, ref, atol=1e-4, rtol=1e-4)

    # Exercise the multi-tile grid + batch padding path (grid of 3 steps).
    batch2 = 384
    x2 = jax.random.randint(jax.random.PRNGKey(1), (batch2, INPUT_SIZE), -1, 2)
    x2 = x2.astype(jnp.float32)
    out2 = jax.block_until_ready(tictactoe_forward(x2, w1, b1, w2, b2, tile_b=128))
    ref2 = reference_forward(x2, w1, b1, w2, b2)
    assert out2.shape == (batch2, OUTPUT_SIZE)
    assert jnp.allclose(out2, ref2, atol=1e-4, rtol=1e-4)

    print("KERNEL_OK")
</pallas_src>

<mosaic_0001>
module attributes {stable_mosaic.version = 11 : i64} {
  func.func @_mlp_kernel(%arg0: i32, %arg1: memref<9x128xbf16, #tpu.memory_space<vmem>>, %arg2: memref<16x9xf32, #tpu.memory_space<vmem>>, %arg3: memref<16x1xf32, #tpu.memory_space<vmem>>, %arg4: memref<9x16xf32, #tpu.memory_space<vmem>>, %arg5: memref<9x1xf32, #tpu.memory_space<vmem>>, %arg6: memref<9x128xf32, #tpu.memory_space<vmem>>) attributes {dimension_semantics = [#tpu.dimension_semantics<parallel>], iteration_bounds = array<i64: 1>, scalar_prefetch = 0 : i64, scratch_operands = 0 : i64, tpu.core_type = #tpu.core_type<tc>, window_params = [{transform_indices = @transform_0, window_bounds = array<i64: 9, 128>}, {pipeline_mode = #tpu.pipeline_mode<synchronous>, transform_indices = @transform_1, window_bounds = array<i64: 16, 9>}, {pipeline_mode = #tpu.pipeline_mode<synchronous>, transform_indices = @transform_2, window_bounds = array<i64: 16, 1>}, {pipeline_mode = #tpu.pipeline_mode<synchronous>, transform_indices = @transform_3, window_bounds = array<i64: 9, 16>}, {pipeline_mode = #tpu.pipeline_mode<synchronous>, transform_indices = @transform_4, window_bounds = array<i64: 9, 1>}, {transform_indices = @transform_5, window_bounds = array<i64: 9, 128>}]} {
    %c0 = arith.constant 0 : index
    %c0_0 = arith.constant 0 : index
    %0 = vector.load %arg1[%c0, %c0_0] : memref<9x128xbf16, #tpu.memory_space<vmem>>, vector<9x128xbf16>
    %1 = arith.extf %0 : vector<9x128xbf16> to vector<9x128xf32>
    %c0_1 = arith.constant 0 : index
    %c0_2 = arith.constant 0 : index
    %2 = vector.load %arg2[%c0_1, %c0_2] : memref<16x9xf32, #tpu.memory_space<vmem>>, vector<16x9xf32>
    %cst = arith.constant dense<0.000000e+00> : vector<16x128xf32>
    %3 = tpu.matmul %2, %1, %cst {dimension_numbers = #tpu.dot_dimension_numbers<[1], [0], [0], [1], [0, 0, 1, 1], [], []>} : vector<16x9xf32>, vector<9x128xf32>, vector<16x128xf32> -> vector<16x128xf32>
    %c0_3 = arith.constant 0 : index
    %c0_4 = arith.constant 0 : index
    %4 = vector.load %arg3[%c0_3, %c0_4] : memref<16x1xf32, #tpu.memory_space<vmem>>, vector<16x1xf32>
    %5 = vector.broadcast %4 : vector<16x1xf32> to vector<16x128xf32>
    %6 = arith.addf %3, %5 : vector<16x128xf32>
    %cst_5 = arith.constant 0.000000e+00 : f32
    %7 = vector.broadcast %cst_5 : f32 to vector<16x128xf32>
    %8 = arith.maximumf %6, %7 : vector<16x128xf32>
    %c0_6 = arith.constant 0 : index
    %c0_7 = arith.constant 0 : index
    %9 = vector.load %arg4[%c0_6, %c0_7] : memref<9x16xf32, #tpu.memory_space<vmem>>, vector<9x16xf32>
    %cst_8 = arith.constant dense<0.000000e+00> : vector<9x128xf32>
    %10 = tpu.matmul %9, %8, %cst_8 {dimension_numbers = #tpu.dot_dimension_numbers<[1], [0], [0], [1], [0, 0, 1, 1], [], []>} : vector<9x16xf32>, vector<16x128xf32>, vector<9x128xf32> -> vector<9x128xf32>
    %c0_9 = arith.constant 0 : index
    %c0_10 = arith.constant 0 : index
    %11 = vector.load %arg5[%c0_9, %c0_10] : memref<9x1xf32, #tpu.memory_space<vmem>>, vector<9x1xf32>
    %12 = vector.broadcast %11 : vector<9x1xf32> to vector<9x128xf32>
    %13 = arith.addf %10, %12 : vector<9x128xf32>
    %c0_11 = arith.constant 0 : index
    %c0_12 = arith.constant 0 : index
    %14 = vector.load %arg6[%c0_11, %c0_12] : memref<9x128xf32, #tpu.memory_space<vmem>>, vector<9x128xf32>
    tpu.vector_store %arg6[%c0_11, %c0_12], %13 {strides = array<i32>} : memref<9x128xf32, #tpu.memory_space<vmem>>, vector<9x128xf32>,
    return
  }
  func.func @transform_0(%arg0: i32) -> (i32, i32) {
    %c0_i32 = arith.constant 0 : i32
    %c0_i32_0 = arith.constant 0 : i32
    return %c0_i32, %arg0 : i32, i32
  }
  func.func @transform_1(%arg0: i32) -> (i32, i32) {
    %c0_i32 = arith.constant 0 : i32
    %c0_i32_0 = arith.constant 0 : i32
    %c0_i32_1 = arith.constant 0 : i32
    return %c0_i32, %c0_i32_0 : i32, i32
  }
  func.func @transform_2(%arg0: i32) -> (i32, i32) {
    %c0_i32 = arith.constant 0 : i32
    %c0_i32_0 = arith.constant 0 : i32
    %c0_i32_1 = arith.constant 0 : i32
    return %c0_i32, %c0_i32_0 : i32, i32
  }
  func.func @transform_3(%arg0: i32) -> (i32, i32) {
    %c0_i32 = arith.constant 0 : i32
    %c0_i32_0 = arith.constant 0 : i32
    %c0_i32_1 = arith.constant 0 : i32
    return %c0_i32, %c0_i32_0 : i32, i32
  }
  func.func @transform_4(%arg0: i32) -> (i32, i32) {
    %c0_i32 = arith.constant 0 : i32
    %c0_i32_0 = arith.constant 0 : i32
    %c0_i32_1 = arith.constant 0 : i32
    return %c0_i32, %c0_i32_0 : i32, i32
  }
  func.func @transform_5(%arg0: i32) -> (i32, i32) {
    %c0_i32 = arith.constant 0 : i32
    %c0_i32_0 = arith.constant 0 : i32
    return %c0_i32, %arg0 : i32, i32
  }
}

</mosaic_0001>

<llo_original>
// kernel: tictactoe_forward.1
$region0: #{tictactoe_forward.1}
  #allocation0 [shape = 'u32[]', space=smem, size = 0x4, offset = 0x4, fixed_abs, tag = 'smem constant byte address 0x4 - core index']
  #allocation1 [shape = 'u32[144,128]{1,0:T(1,128)}', space=vmem, size = 0x12000, scoped, tag = 'internal scratch']
  %s0 = inlined_call_operand.vmem [shape: bf16[9,128], index: 0, kind: input, shape index: {}]
  %s1 = inlined_call_operand.vmem [shape: f32[16,9], index: 1, kind: input, shape index: {}]
  %s2 = inlined_call_operand.vmem [shape: f32[16,1], index: 2, kind: input, shape index: {}]
  %s3 = inlined_call_operand.vmem [shape: f32[9,16], index: 3, kind: input, shape index: {}]
  %s4 = inlined_call_operand.vmem [shape: f32[9,1], index: 4, kind: input, shape index: {}]
  %s5 = inlined_call_operand.vmem [shape: f32[9,128], index: 5, kind: output, shape index: {}]
  %s6 = sld [smem:[#allocation0]]
  $region30: #{tictactoe_forward.1} parent=0
    _
  %s8 = ssub.s32 1, %s6
  %s9 = scalar_select 0, %s8, %s6
  // Predicated region
  $region2: #{tictactoe_forward.1} parent=0 // pred_check
    _
  $region3: #{tictactoe_forward.1} parent=0 // pred_check_branch
    %11 = sbr.rel (0) target = $region5
  $region4: #{tictactoe_forward.1} parent=0 // pred_region
    _
  $region5: #{tictactoe_forward.1} parent=0 // pred_fallthru
    _
  // Predicated region
  $region6: #{tictactoe_forward.1} parent=0 // pred_check
    _
  $region7: #{tictactoe_forward.1} parent=0 // pred_check_branch
    %13 = sbr.rel (0) target = $region9
  $region8: #{tictactoe_forward.1} parent=0 // pred_region
    _
  $region9: #{tictactoe_forward.1} parent=0 // pred_fallthru
    _
  // Predicated region
  $region10: #{tictactoe_forward.1} parent=0 // pred_check
    _
  $region11: #{tictactoe_forward.1} parent=0 // pred_check_branch
    %15 = sbr.rel (0) target = $region13
  $region12: #{tictactoe_forward.1} parent=0 // pred_region
    _
  $region13: #{tictactoe_forward.1} parent=0 // pred_fallthru
    _
  // Predicated region
  $region14: #{tictactoe_forward.1} parent=0 // pred_check
    _
  $region15: #{tictactoe_forward.1} parent=0 // pred_check_branch
    %17 = sbr.rel (0) target = $region17
  $region16: #{tictactoe_forward.1} parent=0 // pred_region
    _
  $region17: #{tictactoe_forward.1} parent=0 // pred_fallthru
    _
  // Predicated region
  $region18: #{tictactoe_forward.1} parent=0 // pred_check
    _
  $region19: #{tictactoe_forward.1} parent=0 // pred_check_branch
    %19 = sbr.rel (0) target = $region21
  $region20: #{tictactoe_forward.1} parent=0 // pred_region
    _
  $region21: #{tictactoe_forward.1} parent=0 // pred_fallthru
    _
  %v20 = vld [vmem:[%s0] sm:$0xf]
  %v21 = vld [vmem:[%s0 + $0x4] sm:$0x1]
  %v22 = vunpack.c.l.bf16 %v20
  %v23 = vunpack.c.l.bf16 %v21
  %v24 = vld [vmem:[%s1] sm:$0xff]
  %v25 = vld [vmem:[%s1 + $0x8] sm:$0xff]
  %v26 = vld [vmem:[%s2] sm:$0xff]
  %v27 = vld [vmem:[%s2 + $0x8] sm:$0xff]
  %29 = vset.pattern.permute.xlu0 0
  %30 = vperm.xlu0 %29, %v26
  %v31 = vpop.permute.xlu0 %30
  %34 = vset.pattern.permute.xlu0 0
  %35 = vperm.xlu0 %34, %v27
  %v36 = vpop.permute.xlu0 %35
  %vm38 = vcmask 72704
  %v40 = vsel %vm38, %v24, 0
  %v43 = vsel %vm38, %v25, 0
  %vm45 = vcmask 1040384
  %v47 = vsel %vm45, %v23, 0
  %49 = vmatprep.subr.mxu0 0.0
  %50 = vmatpush1.msra.mxu0 %v22
  %51 = vmatprep.subr.mxu0 0.0
  %52 = vmatpush1.msra.mxu0 %v47
  %53 = vmatprep.subr.mxu0 0.0
  %54 = vmatpush1.msra.mxu0 0.0
  %55 = vmatprep.subr.mxu0 0.0
  %56 = vmatpush1.msra.mxu0 0.0
  %57 = vmatprep.subr.mxu0 0.0
  %58 = vmatpush1.msra.mxu0 0.0
  %59 = vmatprep.subr.mxu0 0.0
  %60 = vmatpush1.msra.mxu0 0.0
  %61 = vmatprep.subr.mxu0 0.0
  %62 = vmatpush1.msra.mxu0 0.0
  %63 = vmatprep.subr.mxu0 0.0
  %64 = vmatpush1.msra.mxu0 0.0
  %65 = vmatprep.subr.mxu0 0.0
  %66 = vmatpush1.msra.mxu0 0.0
  %67 = vmatprep.subr.mxu0 0.0
  %68 = vmatpush1.msra.mxu0 0.0
  %69 = vmatprep.subr.mxu0 0.0
  %70 = vmatpush1.msra.mxu0 0.0
  %71 = vmatprep.subr.mxu0 0.0
  %72 = vmatpush1.msra.mxu0 0.0
  %73 = vmatprep.subr.mxu0 0.0
  %74 = vmatpush1.msra.mxu0 0.0
  %75 = vmatprep.subr.mxu0 0.0
  %76 = vmatpush1.msra.mxu0 0.0
  %77 = vmatprep.subr.mxu0 0.0
  %78 = vmatpush1.msra.mxu0 0.0
  %79 = vmatprep.subr.mxu0 0.0
  %80 = vmatpush1.msra.mxu0 0.0
  %81 = vmatprep.subr.mxu0 0.0
  %82 = vmatpush1.msra.mxu0 0.0
  %83 = vmatprep.subr.mxu0 0.0
  %84 = vmatpush1.msra.mxu0 0.0
  %85 = vmatprep.subr.mxu0 0.0
  %86 = vmatpush1.msra.mxu0 0.0
  %87 = vmatprep.subr.mxu0 0.0
  %88 = vmatpush1.msra.mxu0 0.0
  %89 = vmatprep.subr.mxu0 0.0
  %90 = vmatpush1.msra.mxu0 0.0
  %91 = vmatprep.subr.mxu0 0.0
  %92 = vmatpush1.msra.mxu0 0.0
  %93 = vmatprep.subr.mxu0 0.0
  %94 = vmatpush1.msra.mxu0 0.0
  %95 = vmatprep.subr.mxu0 0.0
  %96 = vmatpush1.msra.mxu0 0.0
  %97 = vmatprep.subr.mxu0 0.0
  %98 = vmatpush1.msra.mxu0 0.0
  %99 = vmatprep.subr.mxu0 0.0
  %100 = vmatpush1.msra.mxu0 0.0
  %101 = vmatprep.subr.mxu0 0.0
  %102 = vmatpush1.msra.mxu0 0.0
  %103 = vmatprep.subr.mxu0 0.0
  %104 = vmatpush1.msra.mxu0 0.0
  %105 = vmatprep.subr.mxu0 0.0
  %106 = vmatpush1.msra.mxu0 0.0
  %107 = vmatprep.subr.mxu0 0.0
  %108 = vmatpush1.msra.mxu0 0.0
  %109 = vmatprep.subr.mxu0 0.0
  %110 = vmatpush1.msra.mxu0 0.0
  %111 = vmatprep.subr.mxu0 0.0
  %112 = vmatpush1.msra.mxu0 0.0
  %113 = vmatprep.mubr.f32.mxu0 0.0
  %114 = vmatmul.mubr.f32.gmra.mrb[0].mxu0 %v40
  %v115 = vpop.f32.mrb[0].mxu0
  %v116 = vadd.f32 %v31, %v115
  %v117 = vpop.f32.mrb[0].mxu0
  %118 = vmatprep.mubr.f32.mxu0 0.0
  %119 = vmatmul.mubr.f32.gmra.mrb[0].mxu0 %v43
  %v120 = vpop.f32.mrb[0].mxu0
  %v121 = vadd.f32 %v36, %v120
  %v122 = vpop.f32.mrb[0].mxu0
  %123 = vdwg.mxu0
  %v124 = vmax.f32 %v116, 0.0
  %v125 = vmax.f32 %v121, 0.0
  %v126 = vld [vmem:[%s3] sm:$0xff]
  %v127 = vld [vmem:[%s3 + $0x8] sm:$0x1]
  %v128 = vld [vmem:[%s4] sm:$0xff]
  %v129 = vld [vmem:[%s4 + $0x8] sm:$0x1]
  %131 = vset.pattern.permute.xlu0 0
  %132 = vperm.xlu0 %131, %v128
  %v133 = vpop.permute.xlu0 %132
  %136 = vset.pattern.permute.xlu0 0
  %137 = vperm.xlu0 %136, %v129
  %v138 = vpop.permute.xlu0 %137
  %vm140 = vcmask 130048
  %v142 = vsel %vm140, %v126, 0
  %v145 = vsel %vm140, %v127, 0
  %147 = vmatprep.subr.mxu0 0.0
  %148 = vmatpush1.msra.mxu0 %v124
  %149 = vmatprep.subr.mxu0 0.0
  %150 = vmatpush1.msra.mxu0 %v125
  %151 = vmatprep.subr.mxu0 0.0
  %152 = vmatpush1.msra.mxu0 0.0
  %153 = vmatprep.subr.mxu0 0.0
  %154 = vmatpush1.msra.mxu0 0.0
  %155 = vmatprep.subr.mxu0 0.0
  %156 = vmatpush1.msra.mxu0 0.0
  %157 = vmatprep.subr.mxu0 0.0
  %158 = vmatpush1.msra.mxu0 0.0
  %159 = vmatprep.subr.mxu0 0.0
  %160 = vmatpush1.msra.mxu0 0.0
  %161 = vmatprep.subr.mxu0 0.0
  %162 = vmatpush1.msra.mxu0 0.0
  %163 = vmatprep.subr.mxu0 0.0
  %164 = vmatpush1.msra.mxu0 0.0
  %165 = vmatprep.subr.mxu0 0.0
  %166 = vmatpush1.msra.mxu0 0.0
  %167 = vmatprep.subr.mxu0 0.0
  %168 = vmatpush1.msra.mxu0 0.0
  %169 = vmatprep.subr.mxu0 0.0
  %170 = vmatpush1.msra.mxu0 0.0
  %171 = vmatprep.subr.mxu0 0.0
  %172 = vmatpush1.msra.mxu0 0.0
  %173 = vmatprep.subr.mxu0 0.0
  %174 = vmatpush1.msra.mxu0 0.0
  %175 = vmatprep.subr.mxu0 0.0
  %176 = vmatpush1.msra.mxu0 0.0
  %177 = vmatprep.subr.mxu0 0.0
  %178 = vmatpush1.msra.mxu0 0.0
  %179 = vmatprep.subr.mxu0 0.0
  %180 = vmatpush1.msra.mxu0 0.0
  %181 = vmatprep.subr.mxu0 0.0
  %182 = vmatpush1.msra.mxu0 0.0
  %183 = vmatprep.subr.mxu0 0.0
  %184 = vmatpush1.msra.mxu0 0.0
  %185 = vmatprep.subr.mxu0 0.0
  %186 = vmatpush1.msra.mxu0 0.0
  %187 = vmatprep.subr.mxu0 0.0
  %188 = vmatpush1.msra.mxu0 0.0
  %189 = vmatprep.subr.mxu0 0.0
  %190 = vmatpush1.msra.mxu0 0.0
  %191 = vmatprep.subr.mxu0 0.0
  %192 = vmatpush1.msra.mxu0 0.0
  %193 = vmatprep.subr.mxu0 0.0
  %194 = vmatpush1.msra.mxu0 0.0
  %195 = vmatprep.subr.mxu0 0.0
  %196 = vmatpush1.msra.mxu0 0.0
  %197 = vmatprep.subr.mxu0 0.0
  %198 = vmatpush1.msra.mxu0 0.0
  %199 = vmatprep.subr.mxu0 0.0
  %200 = vmatpush1.msra.mxu0 0.0
  %201 = vmatprep.subr.mxu0 0.0
  %202 = vmatpush1.msra.mxu0 0.0
  %203 = vmatprep.subr.mxu0 0.0
  %204 = vmatpush1.msra.mxu0 0.0
  %205 = vmatprep.subr.mxu0 0.0
  %206 = vmatpush1.msra.mxu0 0.0
  %207 = vmatprep.subr.mxu0 0.0
  %208 = vmatpush1.msra.mxu0 0.0
  %209 = vmatprep.subr.mxu0 0.0
  %210 = vmatpush1.msra.mxu0 0.0
  %211 = vmatprep.mubr.f32.mxu0 0.0
  %212 = vmatmul.mubr.f32.gmra.mrb[0].mxu0 %v142
  %v213 = vpop.f32.mrb[0].mxu0
  %v214 = vadd.f32 %v133, %v213
  %v215 = vpop.f32.mrb[0].mxu0
  %216 = vmatprep.mubr.f32.mxu0 0.0
  %217 = vmatmul.mubr.f32.gmra.mrb[0].mxu0 %v145
  %v218 = vpop.f32.mrb[0].mxu0
  %v219 = vadd.f32 %v138, %v218
  %v220 = vpop.f32.mrb[0].mxu0
  %221 = vdwg.mxu0
  %222 = vst [vmem:[%s5] sm:$0xff] %v214
  %223 = vst [vmem:[%s5 + $0x8] sm:$0x1] %v219
  // Predicated region
  $region22: #{tictactoe_forward.1} parent=0 // pred_check
    _
  $region23: #{tictactoe_forward.1} parent=0 // pred_check_branch
    %225 = sbr.rel (0) target = $region25
  $region24: #{tictactoe_forward.1} parent=0 // pred_region
    _
  $region25: #{tictactoe_forward.1} parent=0 // pred_fallthru
    _
  // Predicated region
  $region26: #{tictactoe_forward.1} parent=0 // pred_check
    _
  $region27: #{tictactoe_forward.1} parent=0 // pred_check_branch
    %227 = sbr.rel (0) target = $region29
  $region28: #{tictactoe_forward.1} parent=0 // pred_region
    _
  $region29: #{tictactoe_forward.1} parent=0 // pred_fallthru
    _

</llo_original>
